<compile_context>
chip_gen: v5e
topology: v5e:2x2
jax: 0.10.0
libtpu: 0.0.40
codegen_flags: <defaults>
</compile_context>

<pallas_src>
import functools

import jax
import jax.numpy as jnp
from jax import lax
from jax.experimental import pallas as pl
from jax.experimental.pallas import tpu as pltpu


def _round_up(x, m):
    return (x + m - 1) // m * m


def _vmem_limit(nbytes):
    # 2x slack over the static estimate, floor 4 MiB, cap at v7x physical 64 MiB.
    return int(min(max(2 * nbytes, 4 * 2 ** 20), 64 * 2 ** 20))


# ---------------------------------------------------------------------------
# Kernel 1: fused QKV projection   (T, F) @ (F, 3F) + (1, 3F) -> (T, 3F)
# ---------------------------------------------------------------------------
def _qkv_proj_kernel(x_ref, w_ref, b_ref, o_ref):
    acc = jnp.dot(x_ref[...], w_ref[...],
                  preferred_element_type=jnp.float32) + b_ref[...]
    o_ref[...] = acc.astype(o_ref.dtype)


# ---------------------------------------------------------------------------
# Kernel 2: flash-style MHSA + output projection
#   q_ref : (H, TQ, dk)   k_ref/v_ref : (H, TK, dk)
#   wo_ref: (H, dk, F)    bo_ref: (1, F)      out_ref: (TQ, F)
#   scratch: m (H,TQ,1)  l (H,TQ,1)  acc (H,TQ,dk)   all f32
# ---------------------------------------------------------------------------
def _attn_kernel(q_ref, k_ref, v_ref, wo_ref, bo_ref, out_ref,
                 m_sc, l_sc, acc_sc, *, seq_len, kv_tile, head):
    j = pl.program_id(1)
    nj = pl.num_programs(1)

    @pl.when(j == 0)
    def _():
        m_sc[...] = jnp.full_like(m_sc, -jnp.inf)
        l_sc[...] = jnp.zeros_like(l_sc)
        acc_sc[...] = jnp.zeros_like(acc_sc)

    q = q_ref[...]
    k = k_ref[...]
    v = v_ref[...]

    # Head-batched scores; dk contracted on both sides -> no materialized
    # transpose.  NOTE: no 1/sqrt(dk) scaling (matches the reference module).
    s = jnp.einsum('hqd,hkd->hqk', q, k,
                   preferred_element_type=jnp.float32)          # (H, TQ, TK)

    h_dim, tq, tk = s.shape
    if seq_len % kv_tile != 0:
        # Mask padded key columns (static check: aligned path emits no mask ops).
        kidx = j * kv_tile + lax.broadcasted_iota(jnp.int32, (h_dim, tq, tk), 2)
        s = jnp.where(kidx < seq_len, s, -1e30)

    # Online softmax update.
    m_prev = m_sc[...]
    m_new = jnp.maximum(m_prev, jnp.max(s, axis=-1, keepdims=True))
    alpha = jnp.exp(m_prev - m_new)
    p = jnp.exp(s - m_new)
    l_sc[...] = alpha * l_sc[...] + jnp.sum(p, axis=-1, keepdims=True)
    acc_sc[...] = alpha * acc_sc[...] + jnp.einsum(
        'hqk,hkd->hqd', p.astype(v.dtype), v,
        preferred_element_type=jnp.float32)
    m_sc[...] = m_new

    @pl.when(j == nj - 1)
    def _():
        # Exact reciprocal keeps the 1e-4 reference check tight; flip to
        # approx=True for the EUP fast path when accuracy budget allows.
        inv_l = pl.reciprocal(l_sc[...], approx=False)
        o_heads = acc_sc[...] * inv_l                            # (H, TQ, dk)
        # Output projection folded per head (statically unrolled): avoids a
        # lane-dim concat / cross-sublane reshuffle; the (TQ, F) store stays
        # lane-dense.
        proj = bo_ref[...].astype(jnp.float32)
        proj = jnp.broadcast_to(proj, out_ref.shape)
        for h in range(head):
            proj = proj + jnp.dot(o_heads[h].astype(wo_ref.dtype), wo_ref[h],
                                  preferred_element_type=jnp.float32)
        out_ref[...] = proj.astype(out_ref.dtype)


# ---------------------------------------------------------------------------
# Wrapper
# ---------------------------------------------------------------------------
def multihead_self_att(embs, params, *, head, compute_dtype=jnp.float32):
    S, F = embs.shape
    assert F % head == 0
    dk = F // head
    wq, bq, wk, bk, wv, bv, wo, bo = params
    itemsize = jnp.dtype(compute_dtype).itemsize

    # --- tiling / sequence padding -----------------------------------------
    T = int(min(256, _round_up(S, 8)))          # query tile == kv tile
    S_pad = _round_up(S, T)
    x = embs.astype(compute_dtype)
    if S_pad != S:
        x = jnp.pad(x, ((0, S_pad - S), (0, 0)))

    # --- parameter plumbing (outside the kernels) ---------------------------
    # PyTorch Linear stores W as (out, in); pre-transpose to (in, out) and fuse.
    wqkv = jnp.concatenate([wq.T, wk.T, wv.T], axis=1).astype(compute_dtype)  # (F, 3F)
    bqkv = jnp.concatenate([bq, bk, bv]).reshape(1, 3 * F).astype(jnp.float32)
    wo_r = wo.T.reshape(head, dk, F).astype(compute_dtype)                    # (H, dk, F)
    bo2 = bo.reshape(1, F).astype(jnp.float32)

    # --- call 1: fused QKV projection ---------------------------------------
    est1 = (2 * T * F * itemsize + 2 * T * 3 * F * itemsize
            + 2 * (F * 3 * F * itemsize + 3 * F * 4))
    qkv = pl.pallas_call(
        _qkv_proj_kernel,
        out_shape=jax.ShapeDtypeStruct((S_pad, 3 * F), compute_dtype),
        grid=(S_pad // T,),
        in_specs=[
            pl.BlockSpec((T, F), lambda i: (i, 0)),          # x tile (pipelined)
            pl.BlockSpec((F, 3 * F), lambda i: (0, 0)),      # fused weight, resident
            pl.BlockSpec((1, 3 * F), lambda i: (0, 0)),      # fused bias, resident
        ],
        out_specs=pl.BlockSpec((T, 3 * F), lambda i: (i, 0)),
        compiler_params=pltpu.CompilerParams(
            dimension_semantics=("parallel",),
            vmem_limit_bytes=_vmem_limit(est1)),
    )(x, wqkv, bqkv)

    # Layout plumbing: lane-dense (S_pad, 3F) slab -> head-batched (H, S_pad, dk).
    qkv = qkv.reshape(S_pad, 3, head, dk).transpose(1, 2, 0, 3)
    q, k, v = qkv[0], qkv[1], qkv[2]

    # --- call 2: flash attention + output projection -------------------------
    est2 = (3 * 2 * head * T * dk * itemsize            # q/k/v tiles (double-buffered)
            + 2 * (head * dk * F * itemsize + F * 4)    # WO + bo
            + 2 * T * F * 4                             # output tile
            + head * T * (2 + dk) * 4)                  # m/l/acc scratch
    kernel = functools.partial(_attn_kernel, seq_len=S, kv_tile=T, head=head)
    out = pl.pallas_call(
        kernel,
        out_shape=jax.ShapeDtypeStruct((S_pad, F), jnp.float32),
        grid=(S_pad // T, S_pad // T),
        in_specs=[
            pl.BlockSpec((head, T, dk), lambda i, j: (0, i, 0)),   # Q
            pl.BlockSpec((head, T, dk), lambda i, j: (0, j, 0)),   # K
            pl.BlockSpec((head, T, dk), lambda i, j: (0, j, 0)),   # V
            pl.BlockSpec((head, dk, F), lambda i, j: (0, 0, 0)),   # WO (H, dk, F), resident
            pl.BlockSpec((1, F), lambda i, j: (0, 0)),             # bo, resident
        ],
        out_specs=pl.BlockSpec((T, F), lambda i, j: (i, 0)),
        scratch_shapes=[
            pltpu.VMEM((head, T, 1), jnp.float32),    # running max
            pltpu.VMEM((head, T, 1), jnp.float32),    # running sum
            pltpu.VMEM((head, T, dk), jnp.float32),   # output accumulator
        ],
        compiler_params=pltpu.CompilerParams(
            dimension_semantics=("parallel", "arbitrary"),
            vmem_limit_bytes=_vmem_limit(est2)),
    )(q, k, v, wo_r, bo2)

    return out[:S]


# ---------------------------------------------------------------------------
# Pure-JAX reference mirroring the PyTorch forward, for verification.
# ---------------------------------------------------------------------------
def _reference(embs, params, head):
    S, F = embs.shape
    dk = F // head
    wq, bq, wk, bk, wv, bv, wo, bo = params
    q = embs @ wq.T + bq
    k = embs @ wk.T + bk
    v = embs @ wv.T + bv
    outs = []
    for h in range(head):
        sl = slice(h * dk, (h + 1) * dk)
        s = q[:, sl] @ k[:, sl].T                 # no 1/sqrt(dk), as in reference
        p = jax.nn.softmax(s, axis=1)
        outs.append(p @ v[:, sl])
    cat = jnp.concatenate(outs, axis=1)
    return cat @ wo.T + bo


if __name__ == "__main__":
    key = jax.random.PRNGKey(0)

    def mk_params(k, f):
        ks = jax.random.split(k, 8)
        mk = lambda kk, shape: jax.random.normal(kk, shape, jnp.float32) * 0.05
        return (mk(ks[0], (f, f)), mk(ks[1], (f,)),
                mk(ks[2], (f, f)), mk(ks[3], (f,)),
                mk(ks[4], (f, f)), mk(ks[5], (f,)),
                mk(ks[6], (f, f)), mk(ks[7], (f,)))

    # Case 1: shapes consistent with the module forward (seq=8, feature=32, head=4).
    SEQ, FEATURE, HEAD = 8, 32, 4
    k0, k1, k2, k3 = jax.random.split(key, 4)
    embs = jax.random.normal(k0, (SEQ, FEATURE), jnp.float32)
    params = mk_params(k1, FEATURE)
    out = jax.block_until_ready(multihead_self_att(embs, params, head=HEAD))
    ref = _reference(embs, params, HEAD)
    assert out.shape == (SEQ, FEATURE)
    assert jnp.allclose(out, ref, atol=1e-4, rtol=1e-4), "case1 mismatch"

    # Case 2: ragged sequence (exercises padding + key-masking path).
    SEQ2, FEATURE2, HEAD2 = 13, 32, 2
    embs2 = jax.random.normal(k2, (SEQ2, FEATURE2), jnp.float32)
    params2 = mk_params(k3, FEATURE2)
    out2 = jax.block_until_ready(multihead_self_att(embs2, params2, head=HEAD2))
    ref2 = _reference(embs2, params2, HEAD2)
    assert out2.shape == (SEQ2, FEATURE2)
    assert jnp.allclose(out2, ref2, atol=1e-4, rtol=1e-4), "case2 mismatch"

    print("KERNEL_OK")
</pallas_src>

<mosaic_0001>
module attributes {stable_mosaic.version = 11 : i64} {
  func.func @_qkv_proj_kernel(%arg0: i32, %arg1: memref<8x32xf32, #tpu.memory_space<vmem>>, %arg2: memref<32x96xf32, #tpu.memory_space<vmem>>, %arg3: memref<1x96xf32, #tpu.memory_space<vmem>>, %arg4: memref<8x96xf32, #tpu.memory_space<vmem>>) attributes {dimension_semantics = [#tpu.dimension_semantics<parallel>], iteration_bounds = array<i64: 1>, scalar_prefetch = 0 : i64, scratch_operands = 0 : i64, tpu.core_type = #tpu.core_type<tc>, window_params = [{transform_indices = @transform_0, window_bounds = array<i64: 8, 32>}, {pipeline_mode = #tpu.pipeline_mode<synchronous>, transform_indices = @transform_1, window_bounds = array<i64: 32, 96>}, {pipeline_mode = #tpu.pipeline_mode<synchronous>, transform_indices = @transform_2, window_bounds = array<i64: 1, 96>}, {transform_indices = @transform_3, window_bounds = array<i64: 8, 96>}]} {
    %c0 = arith.constant 0 : index
    %c0_0 = arith.constant 0 : index
    %0 = vector.load %arg1[%c0, %c0_0] : memref<8x32xf32, #tpu.memory_space<vmem>>, vector<8x32xf32>
    %c0_1 = arith.constant 0 : index
    %c0_2 = arith.constant 0 : index
    %1 = vector.load %arg2[%c0_1, %c0_2] : memref<32x96xf32, #tpu.memory_space<vmem>>, vector<32x96xf32>
    %cst = arith.constant dense<0.000000e+00> : vector<8x96xf32>
    %2 = tpu.matmul %0, %1, %cst {dimension_numbers = #tpu.dot_dimension_numbers<[1], [0], [0], [1], [0, 0, 1, 1], [], []>} : vector<8x32xf32>, vector<32x96xf32>, vector<8x96xf32> -> vector<8x96xf32>
    %c0_3 = arith.constant 0 : index
    %c0_4 = arith.constant 0 : index
    %3 = vector.load %arg3[%c0_3, %c0_4] : memref<1x96xf32, #tpu.memory_space<vmem>>, vector<1x96xf32>
    %4 = vector.broadcast %3 : vector<1x96xf32> to vector<8x96xf32>
    %5 = arith.addf %2, %4 : vector<8x96xf32>
    %c0_5 = arith.constant 0 : index
    %c0_6 = arith.constant 0 : index
    %6 = vector.load %arg4[%c0_5, %c0_6] : memref<8x96xf32, #tpu.memory_space<vmem>>, vector<8x96xf32>
    tpu.vector_store %arg4[%c0_5, %c0_6], %5 {strides = array<i32>} : memref<8x96xf32, #tpu.memory_space<vmem>>, vector<8x96xf32>,
    return
  }
  func.func @transform_0(%arg0: i32) -> (i32, i32) {
    %c0_i32 = arith.constant 0 : i32
    %c0_i32_0 = arith.constant 0 : i32
    return %arg0, %c0_i32 : i32, i32
  }
  func.func @transform_1(%arg0: i32) -> (i32, i32) {
    %c0_i32 = arith.constant 0 : i32
    %c0_i32_0 = arith.constant 0 : i32
    %c0_i32_1 = arith.constant 0 : i32
    return %c0_i32, %c0_i32_0 : i32, i32
  }
  func.func @transform_2(%arg0: i32) -> (i32, i32) {
    %c0_i32 = arith.constant 0 : i32
    %c0_i32_0 = arith.constant 0 : i32
    %c0_i32_1 = arith.constant 0 : i32
    return %c0_i32, %c0_i32_0 : i32, i32
  }
  func.func @transform_3(%arg0: i32) -> (i32, i32) {
    %c0_i32 = arith.constant 0 : i32
    %c0_i32_0 = arith.constant 0 : i32
    return %arg0, %c0_i32 : i32, i32
  }
}

</mosaic_0001>

<llo_original>
// kernel: tpu_custom_call.1
$region0: #{tpu_custom_call.1}
  #allocation0 [shape = 'u32[]', space=smem, size = 0x4, offset = 0x4, fixed_abs, tag = 'smem constant byte address 0x4 - core index']
  #allocation1 [shape = 'u32[72,128]{1,0:T(1,128)}', space=vmem, size = 0x9000, scoped, tag = 'internal scratch']
  %s0 = inlined_call_operand.hbm [shape: f32[8,32], index: 0, kind: input, shape index: {}]
  %s1 = inlined_call_operand.hbm [shape: f32[32,96], index: 1, kind: input, shape index: {}]
  %s2 = inlined_call_operand.vmem [shape: f32[1,96], index: 2, kind: input, shape index: {}]
  %s3 = inlined_call_operand.hbm [shape: f32[8,96], index: 3, kind: output, shape index: {}]
  %s4 = sld [smem:[#allocation0]]
  $region30: #{tpu_custom_call.1} parent=0
    _
  %s6 = ssub.s32 1, %s4
  %s7 = scalar_select 0, %s6, %s4
  $region1: #{tpu_custom_call.1} parent=0
    #allocation2 [shape = 'u8[4096]{0}', space=vmem, size = 0x1000, scoped, tag = 'input window, operand 0, single buffered']
    #allocation3 [shape = 's32[1]{0}', space=sflag, size = 0x4, scoped, tag = 'scoped memory for tpu_custom_call.1']
    #allocation4 [shape = 's32[1]{0}', space=sflag, size = 0x4, scoped, tag = 'scoped memory for tpu_custom_call.1']
    #allocation5 [shape = 'u8[16384]{0}', space=vmem, size = 0x4000, scoped, tag = 'input window, operand 1, single buffered']
    #allocation6 [shape = 's32[1]{0}', space=sflag, size = 0x4, scoped, tag = 'scoped memory for tpu_custom_call.1']
    #allocation7 [shape = 'u8[4096]{0}', space=vmem, size = 0x1000, scoped, tag = 'output window, operand 0, single buffered']
    %8 = vsyncpa [#allocation3], 0
    %9 = vsyncpa [#allocation6], 0
    %10 = vsyncpa [#allocation4], 0
    // Predicated region
    $region2: #{tpu_custom_call.1} parent=1 // pred_check
      _
    $region3: #{tpu_custom_call.1} parent=1 // pred_check_branch
      %12 = sbr.rel (0) target = $region5
    $region4: #{tpu_custom_call.1} parent=1 // pred_region
      %14 = vsyncadd [#allocation3], 0
      %s16 = sshll.u32 %s0, 4
      %s17 = int_to_ptr.hbm [resolvable:$true] %s16
      %s18 = sshll.u32 [#allocation2], 4
      %s19 = int_to_ptr.vmem [resolvable:$true] %s18
      %21 = dma.hbm_to_vmem [thread:$0]  %s17, 128, %s19, [#allocation3]
    $region5: #{tpu_custom_call.1} parent=1 // pred_fallthru
      _
    // Predicated region
    $region6: #{tpu_custom_call.1} parent=1 // pred_check
      _
    $region7: #{tpu_custom_call.1} parent=1 // pred_check_branch
      %23 = sbr.rel (0) target = $region9
    $region8: #{tpu_custom_call.1} parent=1 // pred_region
      %25 = vsyncadd [#allocation6], 0
      %s26 = sshll.u32 %s1, 4
      %s27 = int_to_ptr.hbm [resolvable:$true] %s26
      %s28 = sshll.u32 [#allocation5], 4
      %s29 = int_to_ptr.vmem [resolvable:$true] %s28
      %34 = dma.hbm_to_vmem [thread:$0]  %s27, 512, %s29, [#allocation6], 128, 128, 8
    $region9: #{tpu_custom_call.1} parent=1 // pred_fallthru
      _
    // Predicated region
    $region10: #{tpu_custom_call.1} parent=1 // pred_check
      _
    $region11: #{tpu_custom_call.1} parent=1 // pred_check_branch
      %36 = sbr.rel (0) target = $region13
    $region12: #{tpu_custom_call.1} parent=1 // pred_region
      _
    $region13: #{tpu_custom_call.1} parent=1 // pred_fallthru
      _
    // Predicated region
    $region14: #{tpu_custom_call.1} parent=1 // pred_check
      _
    $region15: #{tpu_custom_call.1} parent=1 // pred_check_branch
      %38 = sbr.rel (0) target = $region17
    $region16: #{tpu_custom_call.1} parent=1 // pred_region
      %40 = dma.done [#allocation3], 128
    $region17: #{tpu_custom_call.1} parent=1 // pred_fallthru
      _
    // Predicated region
    $region18: #{tpu_custom_call.1} parent=1 // pred_check
      _
    $region19: #{tpu_custom_call.1} parent=1 // pred_check_branch
      %42 = sbr.rel (0) target = $region21
    $region20: #{tpu_custom_call.1} parent=1 // pred_region
      %44 = dma.done [#allocation6], 512
    $region21: #{tpu_custom_call.1} parent=1 // pred_fallthru
      _
    %v45 = vld [vmem:[#allocation2] sm:$0xff]
    %v46 = vld [vmem:[#allocation5] sm:$0xff]
    %v47 = vld [vmem:[#allocation5 + $0x8] sm:$0xff]
    %v48 = vld [vmem:[#allocation5 + $0x10] sm:$0xff]
    %v49 = vld [vmem:[#allocation5 + $0x18] sm:$0xff]
    %v50 = vld [vmem:[%s2] sm:$0x1]
    %v52 = vperm.slane %v50, 0
    %vm54 = vcmask 261120
    %v56 = vsel %vm54, %v45, 0
    %58 = vmatpush.msra.mxu0 0.0
    %59 = vmatpush.msra.mxu0 0.0
    %60 = vmatpush.msra.mxu0 0.0
    %61 = vmatpush.msra.mxu0 0.0
    %62 = vmatpush.msra.mxu0 0.0
    %63 = vmatpush.msra.mxu0 0.0
    %64 = vmatpush.msra.mxu0 0.0
    %65 = vmatpush.msra.mxu0 0.0
    %66 = vmatpush.msra.mxu0 0.0
    %67 = vmatpush.msra.mxu0 0.0
    %68 = vmatpush.msra.mxu0 0.0
    %69 = vmatpush.msra.mxu0 0.0
    %70 = vmatpush.msra.mxu0 %v49
    %71 = vmatpush.msra.mxu0 %v48
    %72 = vmatpush.msra.mxu0 %v47
    %73 = vmatpush.msra.mxu0 %v46
    %74 = vmatmul.f32.gmra.mxu0 %v56
    %v75 = vpop.f32.mrf.mxu0
    %v76 = vadd.f32 %v52, %v75
    %77 = vdwg.mxu0
    %vm78 = vcmask 785408
    %79 = vst.msk [vmem:[#allocation7] sm:$0xff] %vm78, %v76
    // Predicated region
    $region22: #{tpu_custom_call.1} parent=1 // pred_check
      _
    $region23: #{tpu_custom_call.1} parent=1 // pred_check_branch
      %81 = sbr.rel (0) target = $region25
    $region24: #{tpu_custom_call.1} parent=1 // pred_region
      %83 = vsyncadd [#allocation4], 0
      %s85 = sshll.u32 [#allocation7], 4
      %s86 = int_to_ptr.vmem [resolvable:$true] %s85
      %s87 = sshll.u32 %s3, 4
      %s88 = int_to_ptr.hbm [resolvable:$true] %s87
      %90 = dma.vmem_to_hbm [thread:$0]  %s86, 128, %s88, [#allocation4]
    $region25: #{tpu_custom_call.1} parent=1 // pred_fallthru
      _
    // Predicated region
    $region26: #{tpu_custom_call.1} parent=1 // pred_check
      _
    $region27: #{tpu_custom_call.1} parent=1 // pred_check_branch
      %92 = sbr.rel (0) target = $region29
    $region28: #{tpu_custom_call.1} parent=1 // pred_region
      %94 = dma.done [#allocation4], 128
    $region29: #{tpu_custom_call.1} parent=1 // pred_fallthru
      _
    %95 = vsyncpa [#allocation3], 1
    %96 = vsyncpa [#allocation6], 1
    %97 = vsyncpa [#allocation4], 1

</llo_original>
